<compile_context>
chip_gen: v5e
topology: v5e:2x2
jax: 0.10.0
libtpu: 0.0.40
codegen_flags: <defaults>
</compile_context>

<pallas_src>
import functools

import jax
import jax.numpy as jnp
from jax.experimental import pallas as pl
from jax.experimental.pallas import tpu as pltpu


def _focal_kernel(x_ref, t_ref, o_ref, *, num_classes, alpha, gamma,
                  eps_softmax, eps_onehot):
    # x_ref: (1, C, TS) logits, t_ref: (1, 1, TS) int8 labels, o_ref: (1, 1, TS) loss.
    # NOTE: the final grid step may be a partial block; its out-of-range lanes hold
    # uninitialised data (exp/log may produce inf/NaN there), but every lane/row is
    # independent and those output lanes are masked on write-back - intentional, do
    # not "fix" with NaN checks.
    x = x_ref[0].astype(jnp.float32)              # (C, TS)
    t = t_ref[0].astype(jnp.int32)                # (1, TS)

    # numerically-stable softmax over the class (sublane) axis
    m = jnp.max(x, axis=0, keepdims=True)         # (1, TS)
    e = jnp.exp(x - m)                            # (C, TS)
    denom = jnp.sum(e, axis=0, keepdims=True)     # (1, TS)

    # approx EUP reciprocal + one Newton step ~ f32-exact 1/denom
    inv = pl.reciprocal(denom, approx=True)
    inv = inv * (2.0 - denom * inv)
    p = e * inv + eps_softmax                     # input_soft

    d = 1.0 - p
    if gamma == 2.0:
        # fast path: no pow (= exp+log) on the EUP.  For p slightly > 1 this yields a
        # ~1e-12 weight instead of 0 - matching torch.pow; difference is negligible.
        w = d * d
    else:
        # clamp so pow(negative, non-integer) cannot produce NaN
        w = jnp.power(jnp.maximum(d, 0.0), gamma)

    focal = (-alpha) * w * jnp.log(p)             # (C, TS)

    # loss = focal[target] + eps_onehot * sum_c(focal_c)
    # unrolled over the (small, static) class count: no iota / compare tile, no XLU
    # sublane reduce.
    sel = jnp.where(t == 0, focal[0:1], 0.0)      # (1, TS)
    tot = focal[0:1]
    for cls in range(1, num_classes):
        fc = focal[cls:cls + 1]
        sel = sel + jnp.where(t == cls, fc, 0.0)
        tot = tot + fc

    o_ref[0] = (sel + eps_onehot * tot).astype(o_ref.dtype)   # lane-dense store


def focal_loss_pallas(logits, target, alpha, gamma=2.0, eps=1e-6, tile_lanes=32768):
    """logits: (N, C, *spatial) float; target: (N, *spatial) integer class indices.
    Returns loss of shape (N, *spatial), dtype = logits.dtype (matches PyTorch)."""
    n, c = logits.shape[0], logits.shape[1]
    spatial = logits.shape[2:]

    if logits.ndim == 2:
        # LaneATT usage: (n_proposals, C) logits + (n_proposals,) labels.  C sits on
        # the minor axis, so a tiny (n_proposals*C elements) transpose produces the
        # classes-on-sublane / rows-on-lane layout the kernel wants.
        # TODO(synk): for a *huge* 2-D input, fold this transpose into the kernel
        # instead of paying the extra HBM round trip.
        x = logits.T.reshape(1, c, n)                    # (1, C, R)
        t = target.astype(jnp.int8).reshape(1, 1, n)     # (1, 1, R)  int8 label stream
        batch, s = 1, n
        out_shape = (n,)
    else:
        # (N, C, *spatial): index the ORIGINAL array - reshape to (N, C, S) is a free
        # row-major view, no transpose / extra HBM traffic.
        s = 1
        for d in spatial:
            s *= int(d)
        x = logits.reshape(n, c, s)
        t = target.astype(jnp.int8).reshape(n, 1, s)
        batch = n
        out_shape = (n,) + tuple(spatial)

    # Tile: multiple of 128 lanes, big enough to amortise per-step overhead, clamped
    # to the problem size.  If the batch axis is 1, cap the tile so the grid still has
    # >= 2 steps (keeps both v7x TensorCores busy via "parallel" semantics).
    tile_lanes = max(128, (int(tile_lanes) // 128) * 128)
    s_padded = pl.cdiv(s, 128) * 128
    if batch == 1:
        half = max(128, pl.cdiv(pl.cdiv(s, 2), 128) * 128)
        tile_s = min(tile_lanes, half)
    else:
        tile_s = min(tile_lanes, s_padded)
    grid = (batch, pl.cdiv(s, tile_s))

    kernel = functools.partial(
        _focal_kernel,
        num_classes=int(c),
        alpha=float(alpha),
        gamma=float(gamma),
        eps_softmax=float(eps),
        eps_onehot=1e-6,  # one_hot() is called with its own default eps inside focal_loss
    )

    out = pl.pallas_call(
        kernel,
        out_shape=jax.ShapeDtypeStruct((batch, 1, s), logits.dtype),
        grid_spec=pltpu.PrefetchScalarGridSpec(
            num_scalar_prefetch=0,
            grid=grid,
            in_specs=[
                pl.BlockSpec((1, c, tile_s), lambda b, i: (b, 0, i)),  # logits tile
                pl.BlockSpec((1, 1, tile_s), lambda b, i: (b, 0, i)),  # int8 labels
            ],
            out_specs=pl.BlockSpec((1, 1, tile_s), lambda b, i: (b, 0, i)),
        ),
        compiler_params=pltpu.CompilerParams(
            dimension_semantics=("parallel", "parallel"),
        ),
    )(x, t)

    return out.reshape(out_shape)


def _focal_loss_ref(logits, target, alpha, gamma=2.0, eps=1e-6):
    # pure-JAX reference mirroring the PyTorch code
    c = logits.shape[1]
    p = jax.nn.softmax(logits.astype(jnp.float32), axis=1) + eps
    oh = jax.nn.one_hot(target, c, axis=1, dtype=jnp.float32) + 1e-6
    w = jnp.power(jnp.maximum(1.0 - p, 0.0), gamma)
    focal = -alpha * w * jnp.log(p)
    return jnp.sum(oh * focal, axis=1).astype(logits.dtype)


if __name__ == "__main__":
    key = jax.random.PRNGKey(0)
    k1, k2, k3, k4 = jax.random.split(key, 4)

    alpha, gamma = 0.25, 2.0

    # Case 1: LaneATT-style usage - (n_proposals, n_classes) logits + class indices.
    n_proposals, num_classes = 200, 4
    logits = jax.random.normal(k1, (n_proposals, num_classes), dtype=jnp.float32)
    target = jax.random.randint(k2, (n_proposals,), 0, num_classes, dtype=jnp.int32)

    loss = jax.block_until_ready(focal_loss_pallas(logits, target, alpha, gamma))
    ref = _focal_loss_ref(logits, target, alpha, gamma)
    assert loss.shape == (n_proposals,)
    assert jnp.allclose(loss, ref, rtol=1e-5, atol=1e-5), "mismatch vs reference (2-D)"

    # Case 2: generic BxCxHxW usage (no wrapper transpose on this path).
    logits4 = jax.random.normal(k3, (2, 4, 16, 16), dtype=jnp.float32)
    target4 = jax.random.randint(k4, (2, 16, 16), 0, 4, dtype=jnp.int32)

    loss4 = jax.block_until_ready(focal_loss_pallas(logits4, target4, alpha, gamma))
    ref4 = _focal_loss_ref(logits4, target4, alpha, gamma)
    assert loss4.shape == (2, 16, 16)
    assert jnp.allclose(loss4, ref4, rtol=1e-5, atol=1e-5), "mismatch vs reference (4-D)"

    print("KERNEL_OK")
</pallas_src>

<mosaic_0001>
module attributes {stable_mosaic.version = 11 : i64} {
  func.func @_focal_kernel(%arg0: i32, %arg1: i32, %arg2: memref<1x4x128xf32, #tpu.memory_space<vmem>>, %arg3: memref<1x1x128xi8, #tpu.memory_space<vmem>>, %arg4: memref<1x1x128xf32, #tpu.memory_space<vmem>>) attributes {dimension_semantics = [#tpu.dimension_semantics<parallel>, #tpu.dimension_semantics<parallel>], iteration_bounds = array<i64: 1, 2>, scalar_prefetch = 0 : i64, scratch_operands = 0 : i64, tpu.core_type = #tpu.core_type<tc>, window_params = [{transform_indices = @transform_0, window_bounds = array<i64: 1, 4, 128>}, {transform_indices = @transform_1, window_bounds = array<i64: 1, 1, 128>}, {transform_indices = @transform_2, window_bounds = array<i64: 1, 1, 128>}]} {
    %c0 = arith.constant 0 : index
    %c0_0 = arith.constant 0 : index
    %c0_1 = arith.constant 0 : index
    %0 = vector.load %arg2[%c0, %c0_0, %c0_1] : memref<1x4x128xf32, #tpu.memory_space<vmem>>, vector<1x4x128xf32>
    %1 = vector.shape_cast %0 : vector<1x4x128xf32> to vector<4x128xf32>
    %c0_2 = arith.constant 0 : index
    %c0_3 = arith.constant 0 : index
    %c0_4 = arith.constant 0 : index
    %2 = vector.load %arg3[%c0_2, %c0_3, %c0_4] : memref<1x1x128xi8, #tpu.memory_space<vmem>>, vector<1x1x128xi8>
    %3 = vector.shape_cast %2 : vector<1x1x128xi8> to vector<1x128xi8>
    %4 = arith.extsi %3 : vector<1x128xi8> to vector<1x128xi32>
    %cst = arith.constant dense<0xFF800000> : vector<128xf32>
    %5 = vector.multi_reduction <maximumf>, %1, %cst [0] : vector<4x128xf32> to vector<128xf32>
    %6 = vector.shape_cast %5 : vector<128xf32> to vector<1x128xf32>
    %7 = vector.broadcast %6 : vector<1x128xf32> to vector<4x128xf32>
    %8 = arith.subf %1, %7 : vector<4x128xf32>
    %9 = math.exp %8 : vector<4x128xf32>
    %cst_5 = arith.constant dense<0.000000e+00> : vector<128xf32>
    %10 = vector.multi_reduction <add>, %9, %cst_5 [0] : vector<4x128xf32> to vector<128xf32>
    %11 = vector.shape_cast %10 : vector<128xf32> to vector<1x128xf32>
    %12 = tpu.reciprocal %11 {approx = true} : vector<1x128xf32> -> vector<1x128xf32>
    %13 = arith.mulf %11, %12 : vector<1x128xf32>
    %cst_6 = arith.constant 2.000000e+00 : f32
    %14 = vector.broadcast %cst_6 : f32 to vector<1x128xf32>
    %15 = arith.subf %14, %13 : vector<1x128xf32>
    %16 = arith.mulf %12, %15 : vector<1x128xf32>
    %17 = vector.broadcast %16 : vector<1x128xf32> to vector<4x128xf32>
    %18 = arith.mulf %9, %17 : vector<4x128xf32>
    %cst_7 = arith.constant 9.99999997E-7 : f32
    %19 = vector.broadcast %cst_7 : f32 to vector<4x128xf32>
    %20 = arith.addf %18, %19 : vector<4x128xf32>
    %cst_8 = arith.constant 1.000000e+00 : f32
    %21 = vector.broadcast %cst_8 : f32 to vector<4x128xf32>
    %22 = arith.subf %21, %20 : vector<4x128xf32>
    %23 = arith.mulf %22, %22 : vector<4x128xf32>
    %cst_9 = arith.constant -2.500000e-01 : f32
    %24 = vector.broadcast %cst_9 : f32 to vector<4x128xf32>
    %25 = arith.mulf %24, %23 : vector<4x128xf32>
    %26 = math.log %20 : vector<4x128xf32>
    %27 = arith.mulf %25, %26 : vector<4x128xf32>
    %c0_i32 = arith.constant 0 : i32
    %28 = vector.broadcast %c0_i32 : i32 to vector<1x128xi32>
    %29 = arith.cmpi eq, %4, %28 : vector<1x128xi32>
    %30 = vector.extract_strided_slice %27 {offsets = [0, 0], sizes = [1, 128], strides = [1, 1]} : vector<4x128xf32> to vector<1x128xf32>
    %cst_10 = arith.constant 0.000000e+00 : f32
    %31 = vector.broadcast %cst_10 : f32 to vector<1x128xf32>
    %32 = arith.select %29, %30, %31 : vector<1x128xi1>, vector<1x128xf32>
    %33 = vector.extract_strided_slice %27 {offsets = [0, 0], sizes = [1, 128], strides = [1, 1]} : vector<4x128xf32> to vector<1x128xf32>
    %34 = vector.extract_strided_slice %27 {offsets = [1, 0], sizes = [1, 128], strides = [1, 1]} : vector<4x128xf32> to vector<1x128xf32>
    %c1_i32 = arith.constant 1 : i32
    %35 = vector.broadcast %c1_i32 : i32 to vector<1x128xi32>
    %36 = arith.cmpi eq, %4, %35 : vector<1x128xi32>
    %cst_11 = arith.constant 0.000000e+00 : f32
    %37 = vector.broadcast %cst_11 : f32 to vector<1x128xf32>
    %38 = arith.select %36, %34, %37 : vector<1x128xi1>, vector<1x128xf32>
    %39 = arith.addf %32, %38 : vector<1x128xf32>
    %40 = arith.addf %33, %34 : vector<1x128xf32>
    %41 = vector.extract_strided_slice %27 {offsets = [2, 0], sizes = [1, 128], strides = [1, 1]} : vector<4x128xf32> to vector<1x128xf32>
    %c2_i32 = arith.constant 2 : i32
    %42 = vector.broadcast %c2_i32 : i32 to vector<1x128xi32>
    %43 = arith.cmpi eq, %4, %42 : vector<1x128xi32>
    %cst_12 = arith.constant 0.000000e+00 : f32
    %44 = vector.broadcast %cst_12 : f32 to vector<1x128xf32>
    %45 = arith.select %43, %41, %44 : vector<1x128xi1>, vector<1x128xf32>
    %46 = arith.addf %39, %45 : vector<1x128xf32>
    %47 = arith.addf %40, %41 : vector<1x128xf32>
    %48 = vector.extract_strided_slice %27 {offsets = [3, 0], sizes = [1, 128], strides = [1, 1]} : vector<4x128xf32> to vector<1x128xf32>
    %c3_i32 = arith.constant 3 : i32
    %49 = vector.broadcast %c3_i32 : i32 to vector<1x128xi32>
    %50 = arith.cmpi eq, %4, %49 : vector<1x128xi32>
    %cst_13 = arith.constant 0.000000e+00 : f32
    %51 = vector.broadcast %cst_13 : f32 to vector<1x128xf32>
    %52 = arith.select %50, %48, %51 : vector<1x128xi1>, vector<1x128xf32>
    %53 = arith.addf %46, %52 : vector<1x128xf32>
    %54 = arith.addf %47, %48 : vector<1x128xf32>
    %cst_14 = arith.constant 9.99999997E-7 : f32
    %55 = vector.broadcast %cst_14 : f32 to vector<1x128xf32>
    %56 = arith.mulf %55, %54 : vector<1x128xf32>
    %57 = arith.addf %53, %56 : vector<1x128xf32>
    %c0_15 = arith.constant 0 : index
    %c0_16 = arith.constant 0 : index
    %c0_17 = arith.constant 0 : index
    %58 = vector.load %arg4[%c0_15, %c0_16, %c0_17] : memref<1x1x128xf32, #tpu.memory_space<vmem>>, vector<1x1x128xf32>
    %59 = vector.shape_cast %58 : vector<1x1x128xf32> to vector<1x128xf32>
    %60 = vector.shape_cast %57 : vector<1x128xf32> to vector<1x1x128xf32>
    tpu.vector_store %arg4[%c0_15, %c0_16, %c0_17], %60 {strides = array<i32>} : memref<1x1x128xf32, #tpu.memory_space<vmem>>, vector<1x1x128xf32>,
    return
  }
  func.func @transform_0(%arg0: i32, %arg1: i32) -> (i32, i32, i32) {
    %c0_i32 = arith.constant 0 : i32
    %c0_i32_0 = arith.constant 0 : i32
    return %arg0, %c0_i32, %arg1 : i32, i32, i32
  }
  func.func @transform_1(%arg0: i32, %arg1: i32) -> (i32, i32, i32) {
    %c0_i32 = arith.constant 0 : i32
    %c0_i32_0 = arith.constant 0 : i32
    return %arg0, %c0_i32, %arg1 : i32, i32, i32
  }
  func.func @transform_2(%arg0: i32, %arg1: i32) -> (i32, i32, i32) {
    %c0_i32 = arith.constant 0 : i32
    %c0_i32_0 = arith.constant 0 : i32
    return %arg0, %c0_i32, %arg1 : i32, i32, i32
  }
}

</mosaic_0001>

<llo_original>
// kernel: tpu_custom_call.1
$region0: #{tpu_custom_call.1}
  #allocation0 [shape = 'u32[]', space=smem, size = 0x4, offset = 0x4, fixed_abs, tag = 'smem constant byte address 0x4 - core index']
  #allocation1 [shape = 'u32[72,128]{1,0:T(1,128)}', space=vmem, size = 0x9000, scoped, tag = 'internal scratch']
  %s0 = inlined_call_operand.hbm [shape: f32[1,4,200], index: 0, kind: input, shape index: {}]
  %s1 = inlined_call_operand.hbm [shape: s8[1,1,200], index: 1, kind: input, shape index: {}]
  %s2 = inlined_call_operand.hbm [shape: f32[1,1,200], index: 2, kind: output, shape index: {}]
  %s3 = sld [smem:[#allocation0]]
  $region49: #{tpu_custom_call.1} parent=0
    _
  %s5 = ssub.s32 1, %s3
  %s6 = scalar_select 0, %s5, %s3
  $region1: #{tpu_custom_call.1} parent=0
    #allocation2 [shape = 'u8[4096]{0}', space=vmem, size = 0x1000, scoped, tag = 'input window, operand 0']
    #allocation3 [shape = 's32[2]{0}', space=sflag, size = 0x8, scoped, tag = 'scoped memory for tpu_custom_call.1']
    #allocation4 [shape = 's32[2]{0}', space=sflag, size = 0x8, scoped, tag = 'scoped memory for tpu_custom_call.1']
    #allocation5 [shape = 'u8[1024]{0}', space=vmem, size = 0x400, scoped, tag = 'input window, operand 1']
    #allocation6 [shape = 's32[2]{0}', space=sflag, size = 0x8, scoped, tag = 'scoped memory for tpu_custom_call.1']
    #allocation7 [shape = 'u8[1024]{0}', space=vmem, size = 0x400, scoped, tag = 'output window, operand 0']
    %7 = vsyncpa [#allocation3], 0
    %s8 = scalar_lea.sflag [#allocation3], 1
    %9 = vsyncpa %s8, 0
    %10 = vsyncpa [#allocation6], 0
    %s11 = scalar_lea.sflag [#allocation6], 1
    %12 = vsyncpa %s11, 0
    %13 = vsyncpa [#allocation4], 0
    %s14 = scalar_lea.sflag [#allocation4], 1
    %15 = vsyncpa %s14, 0
    loop: start=0, step=1, limit=4
    $region2: #{tpu_custom_call.1} parent=1 // loop_pre_header
      _
    $region3: #{tpu_custom_call.1} parent=1 // loop_header
      %s17 = sphi 0, %s21
      %p18 = scmp.ge.s32.totalorder %s17, 4
      %s24 = sphi 0, %s36
      %s25 = sphi 0, %s32
      %s26 = sphi 0, %s24
      %s27 = sphi 0, %s25
      %s28 = sphi 0, %s26
      %s29 = sphi 0, %s27
      %s41 = sphi 0, %s43
      %s44 = sphi 0, %s41
      %s45 = sphi 0, %s44
      %s61 = sphi 0, %s45
      %s69 = sphi 0, %s71
      %s72 = sphi 0, %s69
      %s73 = sphi 0, %s72
      %s89 = sphi 0, %s73
      %s97 = sphi 0, %s99
      %s100 = sphi 0, %s97
      %s101 = sphi 0, %s100
      %s117 = sphi 0, %s101
    $region4: #{tpu_custom_call.1} parent=1 // loop_header_branch
      %20 = sbr.rel (%p18) target = $region8
    $region5: #{tpu_custom_call.1} parent=1 // loop_body
      %s22 = ssub.s32 %s17, 1
      %s23 = ssub.s32 %s17, 2
      %s30 = sadd.s32 1, %s25
      %p31 = scmp.ge.s32.totalorder %s30, 2
      %s32 = scalar_select %p31, 0, %s30
      %s33 = sadd.s32 1, %s24
      %s34 = scalar_select %p31, %s33, %s24
      %p35 = scmp.ge.s32.totalorder %s34, 1
      %s36 = scalar_select %p35, 0, %s34
      %s37 = ssub.s32 %s24, %s36
      %s38 = ssub.s32 %s25, %s32
      %s39 = sor.u32 %s37, %s38
      %p40 = scmp.eq.s32.totalorder %s39, 0
      %s42 = sadd.s32 %s41, 1
      %s43 = scalar_select %p40, %s41, %s42
      %p46 = pneg %p40
      %p47 = scmp.eq.s32.totalorder %s17, 1
      %p48 = por %p46, %p47
      %p49 = scmp.ne.s32.totalorder %s41, %s44
      %p50 = scmp.eq.s32.totalorder %s17, 0
      %p51 = por %p49, %p50
      %p52 = scmp.ne.s32.totalorder %s41, %s44
      %p53 = scmp.eq.s32.totalorder %s22, 1
      %p54 = por %p52, %p53
      %p55 = scmp.ne.s32.totalorder %s44, %s45
      %p56 = scmp.eq.s32.totalorder %s22, 0
      %p57 = por %p55, %p56
      %p58 = scmp.ne.s32.totalorder %s44, %s45
      %p59 = scmp.eq.s32.totalorder %s23, 1
      %p60 = por %p58, %p59
      %p62 = scmp.ne.s32.totalorder %s45, %s61
      %p63 = scmp.eq.s32.totalorder %s23, 0
      %p64 = por %p62, %p63
      %s65 = ssub.s32 %s24, %s36
      %s66 = ssub.s32 %s25, %s32
      %s67 = sor.u32 %s65, %s66
      %p68 = scmp.eq.s32.totalorder %s67, 0
      %s70 = sadd.s32 %s69, 1
      %s71 = scalar_select %p68, %s69, %s70
      %p74 = pneg %p68
      %p75 = scmp.eq.s32.totalorder %s17, 1
      %p76 = por %p74, %p75
      %p77 = scmp.ne.s32.totalorder %s69, %s72
      %p78 = scmp.eq.s32.totalorder %s17, 0
      %p79 = por %p77, %p78
      %p80 = scmp.ne.s32.totalorder %s69, %s72
      %p81 = scmp.eq.s32.totalorder %s22, 1
      %p82 = por %p80, %p81
      %p83 = scmp.ne.s32.totalorder %s72, %s73
      %p84 = scmp.eq.s32.totalorder %s22, 0
      %p85 = por %p83, %p84
      %p86 = scmp.ne.s32.totalorder %s72, %s73
      %p87 = scmp.eq.s32.totalorder %s23, 1
      %p88 = por %p86, %p87
      %p90 = scmp.ne.s32.totalorder %s73, %s89
      %p91 = scmp.eq.s32.totalorder %s23, 0
      %p92 = por %p90, %p91
      %s93 = ssub.s32 %s24, %s36
      %s94 = ssub.s32 %s25, %s32
      %s95 = sor.u32 %s93, %s94
      %p96 = scmp.eq.s32.totalorder %s95, 0
      %s98 = sadd.s32 %s97, 1
      %s99 = scalar_select %p96, %s97, %s98
      %p102 = pneg %p96
      %p103 = scmp.eq.s32.totalorder %s17, 1
      %p104 = por %p102, %p103
      %p105 = scmp.ne.s32.totalorder %s97, %s100
      %p106 = scmp.eq.s32.totalorder %s17, 0
      %p107 = por %p105, %p106
      %p108 = scmp.ne.s32.totalorder %s97, %s100
      %p109 = scmp.eq.s32.totalorder %s22, 1
      %p110 = por %p108, %p109
      %p111 = scmp.ne.s32.totalorder %s100, %s101
      %p112 = scmp.eq.s32.totalorder %s22, 0
      %p113 = por %p111, %p112
      %p114 = scmp.ne.s32.totalorder %s100, %s101
      %p115 = scmp.eq.s32.totalorder %s23, 1
      %p116 = por %p114, %p115
      %p118 = scmp.ne.s32.totalorder %s101, %s117
      %p119 = scmp.eq.s32.totalorder %s23, 0
      %p120 = por %p118, %p119
      %p121 = scmp.le.s32.totalorder 1, %s17
      %p122 = scmp.lt.s32.totalorder %s17, 3
      %p123 = pnand %p121, %p122
      %p124 = pneg %p123
      // Predicated region
      $region9: #{tpu_custom_call.1} parent=5 // pred_check
        _
      $region10: #{tpu_custom_call.1} parent=5 // pred_check_branch
        %126 = sbr.rel (%p123) target = $region12
      $region11: #{tpu_custom_call.1} parent=5 // pred_region
        %s127 = ssub.s32 %s17, 1
      $region12: #{tpu_custom_call.1} parent=5 // pred_fallthru
        _
      %p128 = scmp.lt.s32.totalorder %s17, 2
      // Predicated region
      $region13: #{tpu_custom_call.1} parent=5 // pred_check
        %p129 = pneg %p128
      $region14: #{tpu_custom_call.1} parent=5 // pred_check_branch
        %131 = sbr.rel (%p129) target = $region16
      $region15: #{tpu_custom_call.1} parent=5 // pred_region
        // Predicated region
        $region17: #{tpu_custom_call.1} parent=15 // pred_check
          %p132 = pneg %p51
        $region18: #{tpu_custom_call.1} parent=15 // pred_check_branch
          %134 = sbr.rel (%p132) target = $region20
        $region19: #{tpu_custom_call.1} parent=15 // pred_region
          %s135 = sand.u32 %s41, 1
          %s136 = scalar_lea.sflag [#allocation3], %s135
          %s137 = sand.u32 %s41, 1
          %s138 = smul.addr %s137, 4
          %s139 = scalar_lea.vmem [#allocation2], %s138
          %141 = vsyncadd %s136, 0
          %s142 = smul.addr %s24, 2
          %s143 = sadd.s32 %s25, %s142
          %s144 = smul.addr %s143, 4
          %s145 = scalar_lea.hbm %s0, %s144
          %s147 = sshll.u32 %s145, 4
          %s148 = int_to_ptr.hbm [resolvable:$true] %s147
          %s149 = sshll.u32 %s139, 4
          %s150 = int_to_ptr.vmem [resolvable:$true] %s149
          %152 = dma.hbm_to_vmem [thread:$0]  %s148, 64, %s150, %s136
        $region20: #{tpu_custom_call.1} parent=15 // pred_fallthru
          _
        // Predicated region
        $region21: #{tpu_custom_call.1} parent=15 // pred_check
          %p153 = pneg %p79
        $region22: #{tpu_custom_call.1} parent=15 // pred_check_branch
          %155 = sbr.rel (%p153) target = $region24
        $region23: #{tpu_custom_call.1} parent=15 // pred_region
          %s156 = sand.u32 %s69, 1
          %s157 = scalar_lea.sflag [#allocation6], %s156
          %s158 = sand.u32 %s69, 1
          %s159 = scalar_lea.vmem [#allocation5], %s158
          %161 = vsyncadd %s157, 0
          %s162 = smul.addr %s24, 2
          %s163 = sadd.s32 %s25, %s162
          %s164 = scalar_lea.hbm %s1, %s163
          %s166 = sshll.u32 %s164, 4
          %s167 = int_to_ptr.hbm [resolvable:$true] %s166
          %s168 = sshll.u32 %s159, 4
          %s169 = int_to_ptr.vmem [resolvable:$true] %s168
          %171 = dma.hbm_to_vmem [thread:$0]  %s167, 16, %s169, %s157
        $region24: #{tpu_custom_call.1} parent=15 // pred_fallthru
          _
      $region16: #{tpu_custom_call.1} parent=5 // pred_fallthru
        _
      %p172 = scmp.le.s32.totalorder 1, %s17
      %p173 = scmp.lt.s32.totalorder %s17, 3
      %p174 = pnand %p172, %p173
      %p175 = pneg %p174
      // Predicated region
      $region25: #{tpu_custom_call.1} parent=5 // pred_check
        _
      $region26: #{tpu_custom_call.1} parent=5 // pred_check_branch
        %177 = sbr.rel (%p174) target = $region28
      $region27: #{tpu_custom_call.1} parent=5 // pred_region
        %s178 = ssub.s32 %s17, 1
        %s179 = sand.u32 %s44, 1
        %s180 = scalar_lea.sflag [#allocation3], %s179
        %s181 = sand.u32 %s44, 1
        %s182 = smul.addr %s181, 4
        %s183 = scalar_lea.vmem [#allocation2], %s182
        // Predicated region
        $region29: #{tpu_custom_call.1} parent=27 // pred_check
          %p184 = pneg %p57
        $region30: #{tpu_custom_call.1} parent=27 // pred_check_branch
          %186 = sbr.rel (%p184) target = $region32
        $region31: #{tpu_custom_call.1} parent=27 // pred_region
          %188 = dma.done %s180, 64
        $region32: #{tpu_custom_call.1} parent=27 // pred_fallthru
          _
        %s189 = sand.u32 %s72, 1
        %s190 = scalar_lea.sflag [#allocation6], %s189
        %s191 = sand.u32 %s72, 1
        %s192 = scalar_lea.vmem [#allocation5], %s191
        // Predicated region
        $region33: #{tpu_custom_call.1} parent=27 // pred_check
          %p193 = pneg %p85
        $region34: #{tpu_custom_call.1} parent=27 // pred_check_branch
          %195 = sbr.rel (%p193) target = $region36
        $region35: #{tpu_custom_call.1} parent=27 // pred_region
          %197 = dma.done %s190, 16
        $region36: #{tpu_custom_call.1} parent=27 // pred_fallthru
          _
        %s198 = sand.u32 %s44, 1
        %s199 = scalar_lea.sflag [#allocation3], %s198
        %s200 = sand.u32 %s44, 1
        %s201 = smul.addr %s200, 4
        %s202 = scalar_lea.vmem [#allocation2], %s201
        %p203 = pneg %p57
        %p204 = pneg %p54
        %s205 = sand.u32 %s72, 1
        %s206 = scalar_lea.sflag [#allocation6], %s205
        %s207 = sand.u32 %s72, 1
        %s208 = scalar_lea.vmem [#allocation5], %s207
        %p209 = pneg %p85
        %p210 = pneg %p82
        %p211 = pneg %p113
        %p212 = pneg %p110
        %s213 = sand.u32 %s100, 1
        %s214 = scalar_lea.sflag [#allocation4], %s213
        %s215 = sand.u32 %s100, 1
        %s216 = scalar_lea.vmem [#allocation7], %s215
        %v217 = vld [vmem:[%s183] sm:$0xf]
        %v218 = vld [vmem:[%s192] sm:$0x1]
        %v219 = vunpack.c.0.s8 %v218
        %vm220 = vcmask 1043456
        %v221 = vsel %vm220, %v217, -inf
        %v222 = vrot.slane %v221, 4
        %v223 = vmax.f32 %v221, %v222
        %v224 = vrot.slane %v223, 2
        %v225 = vmax.f32 %v223, %v224
        %v226 = vrot.slane %v225, 1
        %v227 = vmax.f32 %v225, %v226
        %v228 = vsub.f32 %v217, %v227
        %v229 = vmul.f32 %v228, 1.442695
        %v230 = vpow.pop %v229
        %v231 = vsel %vm220, %v230, 0.0
        %v232 = vrot.slane %v231, 4
        %v233 = vadd.f32 %v231, %v232
        %v234 = vrot.slane %v233, 2
        %v235 = vadd.f32 %v233, %v234
        %v236 = vrot.slane %v235, 1
        %v237 = vadd.f32 %v235, %v236
        %v238 = vrcp.pop %v237
        %v239 = vmul.f32 %v237, %v238
        %v240 = vsub.f32 2.0, %v239
        %v241 = vmul.f32 %v238, %v240
        %v242 = vmul.f32 %v230, %v241
        %v243 = vadd.f32 %v242, 1e-06
        %v244 = vsub.f32 1.0, %v243
        %v245 = vmul.f32 %v244, %v244
        %v246 = vmul.f32 %v245, -0.25
        %v247 = vlog2.pop %v243
        %v248 = vmul.f32 %v247, 0.6931472
        %v249 = vmul.f32 %v246, %v248
        %vm250 = vcmp.eq.s32.totalorder %v219, 0
        %v251 = vsel %vm250, %v249, 0.0
        %vm252 = vcmp.eq.s32.totalorder %v219, 1
        %v254 = vrot.slane %v249, 5
        %v255 = vrot.slane %v254, 4
        %v257 = vsel %vm252, %v255, 0.0
        %v258 = vadd.f32 %v251, %v257
        %v259 = vrot.slane %v249, 1
        %v261 = vadd.f32 %v249, %v259
        %vm262 = vcmp.eq.s32.totalorder %v219, 2
        %v263 = vrot.slane %v249, 6
        %v264 = vrot.slane %v263, 4
        %v266 = vsel %vm262, %v264, 0.0
        %v267 = vadd.f32 %v258, %v266
        %v268 = vrot.slane %v249, 2
        %v270 = vadd.f32 %v261, %v268
        %vm271 = vcmp.eq.s32.totalorder %v219, 3
        %v272 = vrot.slane %v249, 7
        %v273 = vrot.slane %v272, 4
        %v275 = vsel %vm271, %v273, 0.0
        %v276 = vadd.f32 %v267, %v275
        %v277 = vrot.slane %v249, 3
        %v279 = vadd.f32 %v270, %v277
        %v280 = vmul.f32 %v279, 1e-06
        %v281 = vadd.f32 %v276, %v280
        %282 = vst [vmem:[%s216] sm:$0x1] %v281
        %s283 = sand.u32 %s100, 1
        %s284 = scalar_lea.sflag [#allocation4], %s283
        %s285 = sand.u32 %s100, 1
        %s286 = scalar_lea.vmem [#allocation7], %s285
        // Predicated region
        $region37: #{tpu_custom_call.1} parent=27 // pred_check
          %p287 = pneg %p110
        $region38: #{tpu_custom_call.1} parent=27 // pred_check_branch
          %289 = sbr.rel (%p287) target = $region40
        $region39: #{tpu_custom_call.1} parent=27 // pred_region
          %291 = vsyncadd %s284, 0
          %s292 = smul.addr %s26, 2
          %s293 = sadd.s32 %s27, %s292
          %s294 = scalar_lea.hbm %s2, %s293
          %s296 = sshll.u32 %s286, 4
          %s297 = int_to_ptr.vmem [resolvable:$true] %s296
          %s298 = sshll.u32 %s294, 4
          %s299 = int_to_ptr.hbm [resolvable:$true] %s298
          %301 = dma.vmem_to_hbm [thread:$0]  %s297, 16, %s299, %s284
        $region40: #{tpu_custom_call.1} parent=27 // pred_fallthru
          _
      $region28: #{tpu_custom_call.1} parent=5 // pred_fallthru
        _
      %p302 = scmp.le.s32.totalorder 2, %s17
      // Predicated region
      $region41: #{tpu_custom_call.1} parent=5 // pred_check
        %p303 = pneg %p302
      $region42: #{tpu_custom_call.1} parent=5 // pred_check_branch
        %305 = sbr.rel (%p303) target = $region44
      $region43: #{tpu_custom_call.1} parent=5 // pred_region
        %s306 = ssub.s32 %s17, 2
        // Predicated region
        $region45: #{tpu_custom_call.1} parent=43 // pred_check
          %p307 = pneg %p116
        $region46: #{tpu_custom_call.1} parent=43 // pred_check_branch
          %309 = sbr.rel (%p307) target = $region48
        $region47: #{tpu_custom_call.1} parent=43 // pred_region
          %s310 = sand.u32 %s101, 1
          %s311 = scalar_lea.sflag [#allocation4], %s310
          %s312 = sand.u32 %s101, 1
          %s313 = scalar_lea.vmem [#allocation7], %s312
          %315 = dma.done %s311, 16
        $region48: #{tpu_custom_call.1} parent=43 // pred_fallthru
          _
      $region44: #{tpu_custom_call.1} parent=5 // pred_fallthru
        _
    $region6: #{tpu_custom_call.1} parent=1 // loop_footer
      %s21 = sadd.s32 1, %s17
    $region7: #{tpu_custom_call.1} parent=1 // loop_footer_branch
      %16 = sbr.rel target = $region3
    $region8: #{tpu_custom_call.1} parent=1 // loop_exit
      _
    %316 = vsyncpa [#allocation3], 1
    %s317 = scalar_lea.sflag [#allocation3], 1
    %318 = vsyncpa %s317, 1
    %319 = vsyncpa [#allocation6], 1
    %s320 = scalar_lea.sflag [#allocation6], 1
    %321 = vsyncpa %s320, 1
    %322 = vsyncpa [#allocation4], 1
    %s323 = scalar_lea.sflag [#allocation4], 1
    %324 = vsyncpa %s323, 1

</llo_original>
